<compile_context>
chip_gen: v7x
topology: tpu7x:2x2x1
jax: 0.10.0
libtpu: 0.0.40
codegen_flags: <defaults>
</compile_context>

<pallas_src>
import functools
import math

import jax
import jax.numpy as jnp
from jax.experimental import pallas as pl
from jax.experimental.pallas import tpu as pltpu


_LANE = 128      # vreg lane width  (last dim)
_SUBLANE = 8     # vreg sublane width (second-to-last dim)


def _round_up(x, m):
    return ((x + m - 1) // m) * m


def _cdiv(a, b):
    return -(-a // b)


# ----------------------------------------------------------------------------
# Generation-aware budgets
# ----------------------------------------------------------------------------
@functools.lru_cache(maxsize=1)
def _chip_budgets():
    vmem_cap = 64 << 20                       # conservative default (v7x per-TC)
    try:
        info = pltpu.get_tpu_info()
        vmem_cap = int(getattr(info, "vmem_capacity_bytes", vmem_cap))
    except Exception:
        pass
    if vmem_cap >= (100 << 20):               # v5e / v6e: 128 MiB VMEM, 1 TC
        return {"tile_budget": 40 << 20, "vmem_cap": 96 << 20,
                "split_for_cores": False}
    # v7x-like: 64 MiB VMEM per TensorCore, 2 TCs per chip
    return {"tile_budget": 20 << 20, "vmem_cap": 48 << 20,
            "split_for_cores": True}


def _choose_batch_tiling(batch, max_width, cfg):
    """Batch tile: 8-aligned, within the per-generation VMEM tile budget, and
    with bounded padding waste (b_pad overshoots B by < 8 * n_steps rows)."""
    bp8 = _round_up(max(batch, 1), _SUBLANE)
    per_row_bytes = 6 * max(max_width, 1) * 4          # x/out tiles + intermediates
    cap_rows = cfg["tile_budget"] // per_row_bytes
    cap_rows = max(_SUBLANE, (cap_rows // _SUBLANE) * _SUBLANE)
    desired = max(_SUBLANE, min(1024, cap_rows, bp8))
    n_steps = _cdiv(bp8, desired)
    # Only split a single-tile batch when the chip actually has 2 TensorCores
    # and there is enough batch to keep both busy (serial loop otherwise).
    if n_steps == 1 and cfg["split_for_cores"] and bp8 >= 512:
        n_steps = 2
    tile_b = _round_up(_cdiv(bp8, n_steps), _SUBLANE)
    b_pad = n_steps * tile_b
    return tile_b, b_pad, n_steps


# ----------------------------------------------------------------------------
# Fused kernel: whole Linear/ReLU/Tanh chain, parameters resident in VMEM
# ----------------------------------------------------------------------------
def _fused_chain_kernel(x_ref, *refs, ops):
    """refs = (w0, b0, w1, b1, ..., o_ref); `ops` is a static tuple of op tags."""
    o_ref = refs[-1]
    prm = refs[:-1]
    h = x_ref[...].astype(jnp.float32)
    pi = 0
    for op in ops:
        if op == "linear":
            w_ref, b_ref = prm[pi], prm[pi + 1]
            pi += 2
            # MXU matmul with f32 accumulation; bias add is free VPU filler.
            h = jnp.dot(h, w_ref[...], preferred_element_type=jnp.float32) + b_ref[...]
        elif op == "relu":
            h = jnp.maximum(h, 0.0)
        elif op == "tanh":
            h = jnp.tanh(h)          # EUP slot, overlaps with everything else
        else:
            raise ValueError(f"unknown op {op!r}")
    o_ref[...] = h.astype(o_ref.dtype)


def _make_fused_forward(ops, x_shape, x_dtype, param_shapes, cfg, use_buffered):
    batch, fin = int(x_shape[0]), int(x_shape[1])

    widths = [fin]
    pi = 0
    for op in ops:
        if op == "linear":
            widths.append(int(param_shapes[pi][1]))
            pi += 2
    fout = widths[-1]
    max_w = max(widths)

    tile_b, b_pad, n_steps = _choose_batch_tiling(batch, max_w, cfg)

    # VMEM budget: double-buffered x/out tiles, resident params (single- or
    # double-buffered), in-kernel intermediates, plus compiler headroom.
    bpe = 4
    param_elems = sum(int(math.prod(s)) for s in param_shapes)
    io_bytes = 2 * tile_b * (fin + fout) * bpe
    wb_bytes = (1 if use_buffered else 2) * param_elems * bpe
    tmp_bytes = 4 * tile_b * max_w * bpe
    vmem_limit = int(min(max(io_bytes + wb_bytes + tmp_bytes + (4 << 20), 16 << 20),
                         cfg["vmem_cap"]))

    # x: batch-tiled, features left at logical width (block last dim == array dim).
    in_specs = [pl.BlockSpec((tile_b, fin), lambda i: (i, 0))]
    for shp in param_shapes:
        if use_buffered:
            in_specs.append(pl.BlockSpec(shp, lambda i: (0, 0),
                                         pipeline_mode=pl.Buffered(1)))
        else:
            in_specs.append(pl.BlockSpec(shp, lambda i: (0, 0)))
    out_spec = pl.BlockSpec((tile_b, fout), lambda i: (i, 0))

    call = pl.pallas_call(
        functools.partial(_fused_chain_kernel, ops=ops),
        out_shape=jax.ShapeDtypeStruct((b_pad, fout), x_dtype),
        grid_spec=pltpu.PrefetchScalarGridSpec(
            num_scalar_prefetch=0,
            grid=(n_steps,),
            in_specs=in_specs,
            out_specs=out_spec,
        ),
        compiler_params=pltpu.CompilerParams(
            dimension_semantics=("parallel",),
            vmem_limit_bytes=vmem_limit,
        ),
    )

    def fwd(x, *params):
        xp = jnp.pad(x, ((0, b_pad - batch), (0, 0))) if b_pad != batch else x
        y = call(xp, *params)
        return y[:batch] if b_pad != batch else y

    return jax.jit(fwd)


# ----------------------------------------------------------------------------
# Gridded fallback: per-layer (M, N, K) matmul with fused bias + activations,
# for layers whose resident weights would not fit in VMEM.
# ----------------------------------------------------------------------------
def _linear_epilogue_kernel(x_ref, w_ref, b_ref, o_ref, acc_ref, *, acts):
    k = pl.program_id(2)

    @pl.when(k == 0)
    def _():
        acc_ref[...] = jnp.zeros_like(acc_ref)

    acc_ref[...] += jnp.dot(x_ref[...], w_ref[...],
                            preferred_element_type=jnp.float32)

    @pl.when(k == pl.num_programs(2) - 1)
    def _():
        h = acc_ref[...] + b_ref[...]
        for a in acts:
            if a == "relu":
                h = jnp.maximum(h, 0.0)
            elif a == "tanh":
                h = jnp.tanh(h)
        o_ref[...] = h.astype(o_ref.dtype)


def _pick_div_tile(dim_pad, max_tile):
    """Largest multiple of 128 that is <= max_tile and divides dim_pad."""
    t = min(dim_pad, max_tile)
    t = max(_LANE, (t // _LANE) * _LANE)
    while dim_pad % t:
        t -= _LANE
    return t


def _make_gridded_forward(ops, x_shape, x_dtype, param_shapes, cfg):
    batch, _ = int(x_shape[0]), int(x_shape[1])
    bp8 = _round_up(max(batch, 1), _SUBLANE)
    n_m = _cdiv(bp8, 256)
    tm = _round_up(_cdiv(bp8, n_m), _SUBLANE)
    b_pad = n_m * tm

    # Split the op chain into leading activations and (linear, trailing acts).
    leading_acts, layers_ops, seen_linear = [], [], False
    for op in ops:
        if op == "linear":
            layers_ops.append([])
            seen_linear = True
        elif seen_linear:
            layers_ops[-1].append(op)
        else:
            leading_acts.append(op)

    layers = []
    pi = 0
    for acts in layers_ops:
        K, N = int(param_shapes[pi][0]), int(param_shapes[pi][1])
        pi += 2
        Kp, Np = _round_up(K, _LANE), _round_up(N, _LANE)
        tk = _pick_div_tile(Kp, 512)
        tn = _pick_div_tile(Np, 512)
        bpe = 4
        est = (2 * (tm * tk + tk * tn + tm * tn) + tm * tn) * bpe + (4 << 20)
        vmem_limit = int(min(max(est, 16 << 20), cfg["vmem_cap"]))
        call = pl.pallas_call(
            functools.partial(_linear_epilogue_kernel, acts=tuple(acts)),
            out_shape=jax.ShapeDtypeStruct((b_pad, Np), jnp.float32),
            grid_spec=pltpu.PrefetchScalarGridSpec(
                num_scalar_prefetch=0,
                grid=(b_pad // tm, Np // tn, Kp // tk),
                in_specs=[
                    pl.BlockSpec((tm, tk), lambda i, j, k: (i, k)),
                    pl.BlockSpec((tk, tn), lambda i, j, k: (k, j)),
                    pl.BlockSpec((1, tn), lambda i, j, k: (0, j)),
                ],
                out_specs=pl.BlockSpec((tm, tn), lambda i, j, k: (i, j)),
                scratch_shapes=[pltpu.VMEM((tm, tn), jnp.float32)],
            ),
            compiler_params=pltpu.CompilerParams(
                dimension_semantics=("parallel", "parallel", "arbitrary"),
                vmem_limit_bytes=vmem_limit,
            ),
        )
        layers.append((call, K, N, Kp, Np))

    def fwd(x, *params):
        h = x.astype(jnp.float32)
        if b_pad != batch:
            h = jnp.pad(h, ((0, b_pad - batch), (0, 0)))
        for a in leading_acts:                       # rare: activation before any Linear
            h = jnp.maximum(h, 0.0) if a == "relu" else jnp.tanh(h)
        pidx = 0
        for call, K, N, Kp, Np in layers:
            w, b = params[pidx], params[pidx + 1]
            pidx += 2
            xk = jnp.pad(h, ((0, 0), (0, Kp - K))) if Kp != K else h
            wp = jnp.pad(w, ((0, Kp - K), (0, Np - N))) if (Kp != K or Np != N) else w
            bb = jnp.pad(b, ((0, 0), (0, Np - N))) if Np != N else b
            y = call(xk, wp, bb)
            h = y[:, :N] if Np != N else y
        out = h[:batch] if b_pad != batch else h
        return out.astype(x_dtype)

    return jax.jit(fwd)


# ----------------------------------------------------------------------------
# Dispatcher: one cached, jitted callable per (op-chain, shapes, dtype)
# ----------------------------------------------------------------------------
def _chain_from_modules(modules, fin):
    ops, params, cur = [], [], fin
    for m in modules:
        if isinstance(m, Linear):
            if m.in_features != cur:
                raise ValueError("feature-size mismatch in module chain")
            ops.append("linear")
            params.extend([m.w, m.b])
            cur = m.out_features
        elif isinstance(m, ReLU):
            ops.append("relu")
        elif isinstance(m, Tanh):
            ops.append("tanh")
        else:
            raise TypeError(f"unsupported module {type(m).__name__}")
    return tuple(ops), params


_FWD_CACHE = {}


def fused_sequential_forward(x, modules, *, force_gridded=False):
    """y = chain(x) computed with Pallas TPU kernels (fused or gridded)."""
    assert x.ndim == 2, "activations are (batch, features)"
    ops, params = _chain_from_modules(modules, x.shape[1])
    param_shapes = tuple(tuple(int(d) for d in p.shape) for p in params)
    key = (ops, tuple(int(d) for d in x.shape), x.dtype, param_shapes,
           bool(force_gridded))

    fn = _FWD_CACHE.get(key)
    if fn is not None:
        return fn(x, *params)

    cfg = _chip_budgets()
    param_bytes = sum(int(math.prod(s)) for s in param_shapes) * 4
    use_gridded = force_gridded or param_bytes > int(0.4 * cfg["vmem_cap"])

    if use_gridded:
        builders = [
            lambda: _make_gridded_forward(ops, x.shape, x.dtype, param_shapes, cfg),
        ]
    else:
        builders = [
            # preferred: resident params single-buffered (block index never changes)
            lambda: _make_fused_forward(ops, x.shape, x.dtype, param_shapes,
                                        cfg, use_buffered=True),
            # fallback: default double-buffering (if pipeline_mode unsupported)
            lambda: _make_fused_forward(ops, x.shape, x.dtype, param_shapes,
                                        cfg, use_buffered=False),
            # last-resort safety net
            lambda: _make_gridded_forward(ops, x.shape, x.dtype, param_shapes, cfg),
        ]

    last_err = None
    for build in builders:
        try:
            cand = build()
            y = cand(x, *params)           # triggers compilation on first use
            _FWD_CACHE[key] = cand
            return y
        except Exception as err:           # version-dependent features only
            last_err = err
    raise last_err


# ----------------------------------------------------------------------------
# Mini "Module" framework mirroring the PyTorch-free reference code
# ----------------------------------------------------------------------------
class Module:
    def init_params(self, init_type, gain, epsilon):
        pass

    def forward(self, *inp):
        raise NotImplementedError

    def backward(self, *gradwrtoutput):
        raise NotImplementedError

    def param(self):
        return []

    def update(self, lr):
        pass

    def zero_grad(self):
        pass


class Linear(Module):
    _key_counter = 0

    def __init__(self, in_features, out_features):
        self.in_features = in_features
        self.out_features = out_features
        self.w = jnp.zeros((in_features, out_features), jnp.float32)
        self.b = jnp.zeros((1, out_features), jnp.float32)   # (1, Fout) once, at init
        self._key = jax.random.fold_in(jax.random.PRNGKey(0), Linear._key_counter)
        Linear._key_counter += 1

    def init_params(self, init_type, gain, epsilon):
        if init_type == "zero":
            self.w = jnp.zeros_like(self.w)
            self.b = jnp.zeros_like(self.b)
        elif init_type == "xavier":
            std = gain * math.sqrt(2.0 / (self.in_features + self.out_features))
            kw, kb = jax.random.split(self._key)
            self.w = std * jax.random.normal(kw, self.w.shape, jnp.float32)
            self.b = 0.01 * jax.random.normal(kb, self.b.shape, jnp.float32)
        # init_type is None -> leave as is

    def forward(self, x):
        return fused_sequential_forward(x, [self])

    def param(self):
        return [self.w, self.b]


class ReLU(Module):
    def forward(self, x):
        return fused_sequential_forward(x, [self])


class Tanh(Module):
    def forward(self, x):
        return fused_sequential_forward(x, [self])


class Sequential(Module):
    def __init__(self, *modules, init_type="zero", init_gain=1.0, epsilon=1e-06):
        self.modules = list(modules)
        self.init_type = init_type
        self.init_gain = init_gain
        self.epsilon = epsilon
        if init_type is not None:
            for module in self.modules:
                module.init_params(self.init_type, self.init_gain, self.epsilon)

    def init_params(self):
        for module in self.modules:
            module.init_params(self.init_type, self.init_gain, self.epsilon)

    def forward(self, *inp):
        # No defensive clone: the fused kernel never mutates its input refs,
        # and the whole module chain runs inside a single cached pallas_call.
        return fused_sequential_forward(inp[0], self.modules)

    def param(self):
        return [p for m in self.modules for p in m.param()]

    # TODO(synk): backward/update/zero_grad are training-only and not implemented as kernels.


# ----------------------------------------------------------------------------
# Reference (plain JAX) forward for correctness checking
# ----------------------------------------------------------------------------
def reference_forward(x, modules):
    y = x
    for m in modules:
        if isinstance(m, Linear):
            y = y @ m.w + m.b            # b is (1, Fout), broadcasts over batch
        elif isinstance(m, ReLU):
            y = jnp.maximum(y, 0.0)
        elif isinstance(m, Tanh):
            y = jnp.tanh(y)
    return y


if __name__ == "__main__":
    batch, in_f, hidden, out_f = 8, 32, 64, 16

    net = Sequential(
        Linear(in_f, hidden),
        ReLU(),
        Linear(hidden, out_f),
        Tanh(),
        init_type="xavier",   # deterministic non-trivial init ('zero' would give all-zeros)
        init_gain=1.0,
    )

    # small-batch case (single tile, fully-resident fused kernel)
    x = jax.random.normal(jax.random.PRNGKey(0), (batch, in_f), jnp.float32)
    y = jax.block_until_ready(net.forward(x))
    y_ref = reference_forward(x, net.modules)
    assert y.shape == (batch, out_f)
    assert jnp.allclose(y, y_ref, atol=1e-5, rtol=1e-5), "mismatch vs reference (small batch)"

    # second call must hit the cached jitted executable (no re-trace / re-pack)
    y_again = jax.block_until_ready(net.forward(x))
    assert jnp.allclose(y_again, y_ref, atol=1e-5, rtol=1e-5), "cache-hit mismatch"

    # ragged batch (exercises batch padding to a multiple of 8 and output slice)
    x2 = jax.random.normal(jax.random.PRNGKey(1), (100, in_f), jnp.float32)
    y2 = jax.block_until_ready(net.forward(x2))
    y2_ref = reference_forward(x2, net.modules)
    assert y2.shape == (100, out_f)
    assert jnp.allclose(y2, y2_ref, atol=1e-5, rtol=1e-5), "mismatch vs reference (ragged batch)"

    # exercise the (M, N, K)-gridded fallback used when weights are too large
    # to stay resident in VMEM (forced here so the small test covers the path)
    y3 = jax.block_until_ready(
        fused_sequential_forward(x2, net.modules, force_gridded=True))
    assert y3.shape == (100, out_f)
    assert jnp.allclose(y3, y2_ref, atol=1e-5, rtol=1e-5), "mismatch vs reference (gridded path)"

    print("KERNEL_OK")
</pallas_src>

<mosaic_0001>
module attributes {stable_mosaic.version = 11 : i64} {
  func.func @_fused_chain_kernel(%arg0: i32, %arg1: memref<8x32xf32, #tpu.memory_space<vmem>>, %arg2: memref<32x64xf32, #tpu.memory_space<vmem>>, %arg3: memref<1x64xf32, #tpu.memory_space<vmem>>, %arg4: memref<64x16xf32, #tpu.memory_space<vmem>>, %arg5: memref<1x16xf32, #tpu.memory_space<vmem>>, %arg6: memref<8x16xf32, #tpu.memory_space<vmem>>) attributes {dimension_semantics = [#tpu.dimension_semantics<parallel>], iteration_bounds = array<i64: 1>, scalar_prefetch = 0 : i64, scratch_operands = 0 : i64, tpu.core_type = #tpu.core_type<tc>, window_params = [{transform_indices = @transform_0, window_bounds = array<i64: 8, 32>}, {pipeline_mode = #tpu.pipeline_mode<synchronous>, transform_indices = @transform_1, window_bounds = array<i64: 32, 64>}, {pipeline_mode = #tpu.pipeline_mode<synchronous>, transform_indices = @transform_2, window_bounds = array<i64: 1, 64>}, {pipeline_mode = #tpu.pipeline_mode<synchronous>, transform_indices = @transform_3, window_bounds = array<i64: 64, 16>}, {pipeline_mode = #tpu.pipeline_mode<synchronous>, transform_indices = @transform_4, window_bounds = array<i64: 1, 16>}, {transform_indices = @transform_5, window_bounds = array<i64: 8, 16>}]} {
    %c0 = arith.constant 0 : index
    %c0_0 = arith.constant 0 : index
    %0 = vector.load %arg1[%c0, %c0_0] : memref<8x32xf32, #tpu.memory_space<vmem>>, vector<8x32xf32>
    %c0_1 = arith.constant 0 : index
    %c0_2 = arith.constant 0 : index
    %1 = vector.load %arg2[%c0_1, %c0_2] : memref<32x64xf32, #tpu.memory_space<vmem>>, vector<32x64xf32>
    %cst = arith.constant dense<0.000000e+00> : vector<8x64xf32>
    %2 = tpu.matmul %0, %1, %cst {dimension_numbers = #tpu.dot_dimension_numbers<[1], [0], [0], [1], [0, 0, 1, 1], [], []>} : vector<8x32xf32>, vector<32x64xf32>, vector<8x64xf32> -> vector<8x64xf32>
    %c0_3 = arith.constant 0 : index
    %c0_4 = arith.constant 0 : index
    %3 = vector.load %arg3[%c0_3, %c0_4] : memref<1x64xf32, #tpu.memory_space<vmem>>, vector<1x64xf32>
    %4 = vector.broadcast %3 : vector<1x64xf32> to vector<8x64xf32>
    %5 = arith.addf %2, %4 : vector<8x64xf32>
    %cst_5 = arith.constant 0.000000e+00 : f32
    %6 = vector.broadcast %cst_5 : f32 to vector<8x64xf32>
    %7 = arith.maximumf %5, %6 : vector<8x64xf32>
    %c0_6 = arith.constant 0 : index
    %c0_7 = arith.constant 0 : index
    %8 = vector.load %arg4[%c0_6, %c0_7] : memref<64x16xf32, #tpu.memory_space<vmem>>, vector<64x16xf32>
    %cst_8 = arith.constant dense<0.000000e+00> : vector<8x16xf32>
    %9 = tpu.matmul %7, %8, %cst_8 {dimension_numbers = #tpu.dot_dimension_numbers<[1], [0], [0], [1], [0, 0, 1, 1], [], []>} : vector<8x64xf32>, vector<64x16xf32>, vector<8x16xf32> -> vector<8x16xf32>
    %c0_9 = arith.constant 0 : index
    %c0_10 = arith.constant 0 : index
    %10 = vector.load %arg5[%c0_9, %c0_10] : memref<1x16xf32, #tpu.memory_space<vmem>>, vector<1x16xf32>
    %11 = vector.broadcast %10 : vector<1x16xf32> to vector<8x16xf32>
    %12 = arith.addf %9, %11 : vector<8x16xf32>
    %13 = math.tanh %12 : vector<8x16xf32>
    %c0_11 = arith.constant 0 : index
    %c0_12 = arith.constant 0 : index
    %14 = vector.load %arg6[%c0_11, %c0_12] : memref<8x16xf32, #tpu.memory_space<vmem>>, vector<8x16xf32>
    tpu.vector_store %arg6[%c0_11, %c0_12], %13 {strides = array<i32>} : memref<8x16xf32, #tpu.memory_space<vmem>>, vector<8x16xf32>,
    return
  }
  func.func @transform_0(%arg0: i32) -> (i32, i32) {
    %c0_i32 = arith.constant 0 : i32
    %c0_i32_0 = arith.constant 0 : i32
    return %arg0, %c0_i32 : i32, i32
  }
  func.func @transform_1(%arg0: i32) -> (i32, i32) {
    %c0_i32 = arith.constant 0 : i32
    %c0_i32_0 = arith.constant 0 : i32
    %c0_i32_1 = arith.constant 0 : i32
    return %c0_i32, %c0_i32_0 : i32, i32
  }
  func.func @transform_2(%arg0: i32) -> (i32, i32) {
    %c0_i32 = arith.constant 0 : i32
    %c0_i32_0 = arith.constant 0 : i32
    %c0_i32_1 = arith.constant 0 : i32
    return %c0_i32, %c0_i32_0 : i32, i32
  }
  func.func @transform_3(%arg0: i32) -> (i32, i32) {
    %c0_i32 = arith.constant 0 : i32
    %c0_i32_0 = arith.constant 0 : i32
    %c0_i32_1 = arith.constant 0 : i32
    return %c0_i32, %c0_i32_0 : i32, i32
  }
  func.func @transform_4(%arg0: i32) -> (i32, i32) {
    %c0_i32 = arith.constant 0 : i32
    %c0_i32_0 = arith.constant 0 : i32
    %c0_i32_1 = arith.constant 0 : i32
    return %c0_i32, %c0_i32_0 : i32, i32
  }
  func.func @transform_5(%arg0: i32) -> (i32, i32) {
    %c0_i32 = arith.constant 0 : i32
    %c0_i32_0 = arith.constant 0 : i32
    return %arg0, %c0_i32 : i32, i32
  }
}

module attributes {stable_mosaic.version = 11 : i64} {
  func.func @_fused_chain_kernel(%arg0: i32, %arg1: memref<8x32xf32, #tpu.memory_space<vmem>>, %arg2: memref<32x64xf32, #tpu.memory_space<vmem>>, %arg3: memref<1x64xf32, #tpu.memory_space<vmem>>, %arg4: memref<64x16xf32, #tpu.memory_space<vmem>>, %arg5: memref<1x16xf32, #tpu.memory_space<vmem>>, %arg6: memref<8x16xf32, #tpu.memory_space<vmem>>) attributes {dimension_semantics = [#tpu.dimension_semantics<parallel>], iteration_bounds = array<i64: 1>, scalar_prefetch = 0 : i64, scratch_operands = 0 : i64, tpu.core_type = #tpu.core_type<tc>, window_params = [{transform_indices = @transform_0, window_bounds = array<i64: 8, 32>}, {pipeline_mode = #tpu.pipeline_mode<synchronous>, transform_indices = @transform_1, window_bounds = array<i64: 32, 64>}, {pipeline_mode = #tpu.pipeline_mode<synchronous>, transform_indices = @transform_2, window_bounds = array<i64: 1, 64>}, {pipeline_mode = #tpu.pipeline_mode<synchronous>, transform_indices = @transform_3, window_bounds = array<i64: 64, 16>}, {pipeline_mode = #tpu.pipeline_mode<synchronous>, transform_indices = @transform_4, window_bounds = array<i64: 1, 16>}, {transform_indices = @transform_5, window_bounds = array<i64: 8, 16>}]} {
    %c0 = arith.constant 0 : index
    %c0_0 = arith.constant 0 : index
    %0 = vector.load %arg1[%c0, %c0_0] : memref<8x32xf32, #tpu.memory_space<vmem>>, vector<8x32xf32>
    %c0_1 = arith.constant 0 : index
    %c0_2 = arith.constant 0 : index
    %1 = vector.load %arg2[%c0_1, %c0_2] : memref<32x64xf32, #tpu.memory_space<vmem>>, vector<32x64xf32>
    %cst = arith.constant dense<0.000000e+00> : vector<8x64xf32>
    %2 = tpu.matmul %0, %1, %cst {dimension_numbers = #tpu.dot_dimension_numbers<[1], [0], [0], [1], [0, 0, 1, 1], [], []>} : vector<8x32xf32>, vector<32x64xf32>, vector<8x64xf32> -> vector<8x64xf32>
    %c0_3 = arith.constant 0 : index
    %c0_4 = arith.constant 0 : index
    %3 = vector.load %arg3[%c0_3, %c0_4] : memref<1x64xf32, #tpu.memory_space<vmem>>, vector<1x64xf32>
    %4 = vector.broadcast %3 : vector<1x64xf32> to vector<8x64xf32>
    %5 = arith.addf %2, %4 : vector<8x64xf32>
    %cst_5 = arith.constant 0.000000e+00 : f32
    %6 = vector.broadcast %cst_5 : f32 to vector<8x64xf32>
    %7 = arith.maximumf %5, %6 : vector<8x64xf32>
    %c0_6 = arith.constant 0 : index
    %c0_7 = arith.constant 0 : index
    %8 = vector.load %arg4[%c0_6, %c0_7] : memref<64x16xf32, #tpu.memory_space<vmem>>, vector<64x16xf32>
    %cst_8 = arith.constant dense<0.000000e+00> : vector<8x16xf32>
    %9 = tpu.matmul %7, %8, %cst_8 {dimension_numbers = #tpu.dot_dimension_numbers<[1], [0], [0], [1], [0, 0, 1, 1], [], []>} : vector<8x64xf32>, vector<64x16xf32>, vector<8x16xf32> -> vector<8x16xf32>
    %c0_9 = arith.constant 0 : index
    %c0_10 = arith.constant 0 : index
    %10 = vector.load %arg5[%c0_9, %c0_10] : memref<1x16xf32, #tpu.memory_space<vmem>>, vector<1x16xf32>
    %11 = vector.broadcast %10 : vector<1x16xf32> to vector<8x16xf32>
    %12 = arith.addf %9, %11 : vector<8x16xf32>
    %13 = math.tanh %12 : vector<8x16xf32>
    %c0_11 = arith.constant 0 : index
    %c0_12 = arith.constant 0 : index
    %14 = vector.load %arg6[%c0_11, %c0_12] : memref<8x16xf32, #tpu.memory_space<vmem>>, vector<8x16xf32>
    tpu.vector_store %arg6[%c0_11, %c0_12], %13 {strides = array<i32>} : memref<8x16xf32, #tpu.memory_space<vmem>>, vector<8x16xf32>,
    return
  }
  func.func @transform_0(%arg0: i32) -> (i32, i32) {
    %c0_i32 = arith.constant 0 : i32
    %c0_i32_0 = arith.constant 0 : i32
    return %arg0, %c0_i32 : i32, i32
  }
  func.func @transform_1(%arg0: i32) -> (i32, i32) {
    %c0_i32 = arith.constant 0 : i32
    %c0_i32_0 = arith.constant 0 : i32
    %c0_i32_1 = arith.constant 0 : i32
    return %c0_i32, %c0_i32_0 : i32, i32
  }
  func.func @transform_2(%arg0: i32) -> (i32, i32) {
    %c0_i32 = arith.constant 0 : i32
    %c0_i32_0 = arith.constant 0 : i32
    %c0_i32_1 = arith.constant 0 : i32
    return %c0_i32, %c0_i32_0 : i32, i32
  }
  func.func @transform_3(%arg0: i32) -> (i32, i32) {
    %c0_i32 = arith.constant 0 : i32
    %c0_i32_0 = arith.constant 0 : i32
    %c0_i32_1 = arith.constant 0 : i32
    return %c0_i32, %c0_i32_0 : i32, i32
  }
  func.func @transform_4(%arg0: i32) -> (i32, i32) {
    %c0_i32 = arith.constant 0 : i32
    %c0_i32_0 = arith.constant 0 : i32
    %c0_i32_1 = arith.constant 0 : i32
    return %c0_i32, %c0_i32_0 : i32, i32
  }
  func.func @transform_5(%arg0: i32) -> (i32, i32) {
    %c0_i32 = arith.constant 0 : i32
    %c0_i32_0 = arith.constant 0 : i32
    return %arg0, %c0_i32 : i32, i32
  }
}

module attributes {stable_mosaic.version = 11 : i64} {
  func.func @_linear_epilogue_kernel(%arg0: i32, %arg1: i32, %arg2: i32, %arg3: memref<8x128xf32, #tpu.memory_space<vmem>>, %arg4: memref<128x128xf32, #tpu.memory_space<vmem>>, %arg5: memref<1x128xf32, #tpu.memory_space<vmem>>, %arg6: memref<8x128xf32, #tpu.memory_space<vmem>>, %arg7: memref<8x128xf32, #tpu.memory_space<vmem>>) attributes {dimension_semantics = [#tpu.dimension_semantics<parallel>, #tpu.dimension_semantics<parallel>, #tpu.dimension_semantics<arbitrary>], iteration_bounds = array<i64: 1, 1, 1>, scalar_prefetch = 0 : i64, scratch_operands = 1 : i64, tpu.core_type = #tpu.core_type<tc>, window_params = [{transform_indices = @transform_0, window_bounds = array<i64: 8, 128>}, {transform_indices = @transform_1, window_bounds = array<i64: 128, 128>}, {transform_indices = @transform_2, window_bounds = array<i64: 1, 128>}, {transform_indices = @transform_3, window_bounds = array<i64: 8, 128>}]} {
    %c0_i32 = arith.constant 0 : i32
    %0 = arith.cmpi eq, %arg2, %c0_i32 : i32
    %1 = arith.extui %0 : i1 to i32
    %c0_i32_0 = arith.constant 0 : i32
    %2 = arith.cmpi ne, %1, %c0_i32_0 : i32
    scf.if %2 {
      %cst_10 = arith.constant 0.000000e+00 : f32
      %12 = vector.broadcast %cst_10 : f32 to vector<8x128xf32>
      %c0_11 = arith.constant 0 : index
      %c0_12 = arith.constant 0 : index
      %13 = vector.load %arg7[%c0_11, %c0_12] : memref<8x128xf32, #tpu.memory_space<vmem>>, vector<8x128xf32>
      tpu.vector_store %arg7[%c0_11, %c0_12], %12 {strides = array<i32>} : memref<8x128xf32, #tpu.memory_space<vmem>>, vector<8x128xf32>,
    } else {
    }
    %c0 = arith.constant 0 : index
    %c0_1 = arith.constant 0 : index
    %3 = vector.load %arg7[%c0, %c0_1] : memref<8x128xf32, #tpu.memory_space<vmem>>, vector<8x128xf32>
    %c0_2 = arith.constant 0 : index
    %c0_3 = arith.constant 0 : index
    %4 = vector.load %arg3[%c0_2, %c0_3] : memref<8x128xf32, #tpu.memory_space<vmem>>, vector<8x128xf32>
    %c0_4 = arith.constant 0 : index
    %c0_5 = arith.constant 0 : index
    %5 = vector.load %arg4[%c0_4, %c0_5] : memref<128x128xf32, #tpu.memory_space<vmem>>, vector<128x128xf32>
    %cst = arith.constant dense<0.000000e+00> : vector<8x128xf32>
    %6 = tpu.matmul %4, %5, %cst {dimension_numbers = #tpu.dot_dimension_numbers<[1], [0], [0], [1], [0, 0, 1, 1], [], []>} : vector<8x128xf32>, vector<128x128xf32>, vector<8x128xf32> -> vector<8x128xf32>
    %7 = arith.addf %3, %6 : vector<8x128xf32>
    %c0_6 = arith.constant 0 : index
    %c0_7 = arith.constant 0 : index
    %8 = vector.load %arg7[%c0_6, %c0_7] : memref<8x128xf32, #tpu.memory_space<vmem>>, vector<8x128xf32>
    tpu.vector_store %arg7[%c0_6, %c0_7], %7 {strides = array<i32>} : memref<8x128xf32, #tpu.memory_space<vmem>>, vector<8x128xf32>,
    %c0_i32_8 = arith.constant 0 : i32
    %9 = arith.cmpi eq, %arg2, %c0_i32_8 : i32
    %10 = arith.extui %9 : i1 to i32
    %c0_i32_9 = arith.constant 0 : i32
    %11 = arith.cmpi ne, %10, %c0_i32_9 : i32
    scf.if %11 {
      %c0_10 = arith.constant 0 : index
      %c0_11 = arith.constant 0 : index
      %12 = vector.load %arg7[%c0_10, %c0_11] : memref<8x128xf32, #tpu.memory_space<vmem>>, vector<8x128xf32>
      %c0_12 = arith.constant 0 : index
      %c0_13 = arith.constant 0 : index
      %13 = vector.load %arg5[%c0_12, %c0_13] : memref<1x128xf32, #tpu.memory_space<vmem>>, vector<1x128xf32>
      %14 = vector.broadcast %13 : vector<1x128xf32> to vector<8x128xf32>
      %15 = arith.addf %12, %14 : vector<8x128xf32>
      %cst_14 = arith.constant 0.000000e+00 : f32
      %16 = vector.broadcast %cst_14 : f32 to vector<8x128xf32>
      %17 = arith.maximumf %15, %16 : vector<8x128xf32>
      %c0_15 = arith.constant 0 : index
      %c0_16 = arith.constant 0 : index
      %18 = vector.load %arg6[%c0_15, %c0_16] : memref<8x128xf32, #tpu.memory_space<vmem>>, vector<8x128xf32>
      tpu.vector_store %arg6[%c0_15, %c0_16], %17 {strides = array<i32>} : memref<8x128xf32, #tpu.memory_space<vmem>>, vector<8x128xf32>,
    } else {
    }
    return
  }
  func.func @transform_0(%arg0: i32, %arg1: i32, %arg2: i32) -> (i32, i32) {
    %c0_i32 = arith.constant 0 : i32
    return %arg0, %arg2 : i32, i32
  }
  func.func @transform_1(%arg0: i32, %arg1: i32, %arg2: i32) -> (i32, i32) {
    %c0_i32 = arith.constant 0 : i32
    return %arg2, %arg1 : i32, i32
  }
  func.func @transform_2(%arg0: i32, %arg1: i32, %arg2: i32) -> (i32, i32) {
    %c0_i32 = arith.constant 0 : i32
    %c0_i32_0 = arith.constant 0 : i32
    return %c0_i32, %arg1 : i32, i32
  }
  func.func @transform_3(%arg0: i32, %arg1: i32, %arg2: i32) -> (i32, i32) {
    %c0_i32 = arith.constant 0 : i32
    return %arg0, %arg1 : i32, i32
  }
}

module attributes {stable_mosaic.version = 11 : i64} {
  func.func @_linear_epilogue_kernel(%arg0: i32, %arg1: i32, %arg2: i32, %arg3: memref<8x128xf32, #tpu.memory_space<vmem>>, %arg4: memref<128x128xf32, #tpu.memory_space<vmem>>, %arg5: memref<1x128xf32, #tpu.memory_space<vmem>>, %arg6: memref<8x128xf32, #tpu.memory_space<vmem>>, %arg7: memref<8x128xf32, #tpu.memory_space<vmem>>) attributes {dimension_semantics = [#tpu.dimension_semantics<parallel>, #tpu.dimension_semantics<parallel>, #tpu.dimension_semantics<arbitrary>], iteration_bounds = array<i64: 1, 1, 1>, scalar_prefetch = 0 : i64, scratch_operands = 1 : i64, tpu.core_type = #tpu.core_type<tc>, window_params = [{transform_indices = @transform_0, window_bounds = array<i64: 8, 128>}, {transform_indices = @transform_1, window_bounds = array<i64: 128, 128>}, {transform_indices = @transform_2, window_bounds = array<i64: 1, 128>}, {transform_indices = @transform_3, window_bounds = array<i64: 8, 128>}]} {
    %c0_i32 = arith.constant 0 : i32
    %0 = arith.cmpi eq, %arg2, %c0_i32 : i32
    %1 = arith.extui %0 : i1 to i32
    %c0_i32_0 = arith.constant 0 : i32
    %2 = arith.cmpi ne, %1, %c0_i32_0 : i32
    scf.if %2 {
      %cst_10 = arith.constant 0.000000e+00 : f32
      %12 = vector.broadcast %cst_10 : f32 to vector<8x128xf32>
      %c0_11 = arith.constant 0 : index
      %c0_12 = arith.constant 0 : index
      %13 = vector.load %arg7[%c0_11, %c0_12] : memref<8x128xf32, #tpu.memory_space<vmem>>, vector<8x128xf32>
      tpu.vector_store %arg7[%c0_11, %c0_12], %12 {strides = array<i32>} : memref<8x128xf32, #tpu.memory_space<vmem>>, vector<8x128xf32>,
    } else {
    }
    %c0 = arith.constant 0 : index
    %c0_1 = arith.constant 0 : index
    %3 = vector.load %arg7[%c0, %c0_1] : memref<8x128xf32, #tpu.memory_space<vmem>>, vector<8x128xf32>
    %c0_2 = arith.constant 0 : index
    %c0_3 = arith.constant 0 : index
    %4 = vector.load %arg3[%c0_2, %c0_3] : memref<8x128xf32, #tpu.memory_space<vmem>>, vector<8x128xf32>
    %c0_4 = arith.constant 0 : index
    %c0_5 = arith.constant 0 : index
    %5 = vector.load %arg4[%c0_4, %c0_5] : memref<128x128xf32, #tpu.memory_space<vmem>>, vector<128x128xf32>
    %cst = arith.constant dense<0.000000e+00> : vector<8x128xf32>
    %6 = tpu.matmul %4, %5, %cst {dimension_numbers = #tpu.dot_dimension_numbers<[1], [0], [0], [1], [0, 0, 1, 1], [], []>} : vector<8x128xf32>, vector<128x128xf32>, vector<8x128xf32> -> vector<8x128xf32>
    %7 = arith.addf %3, %6 : vector<8x128xf32>
    %c0_6 = arith.constant 0 : index
    %c0_7 = arith.constant 0 : index
    %8 = vector.load %arg7[%c0_6, %c0_7] : memref<8x128xf32, #tpu.memory_space<vmem>>, vector<8x128xf32>
    tpu.vector_store %arg7[%c0_6, %c0_7], %7 {strides = array<i32>} : memref<8x128xf32, #tpu.memory_space<vmem>>, vector<8x128xf32>,
    %c0_i32_8 = arith.constant 0 : i32
    %9 = arith.cmpi eq, %arg2, %c0_i32_8 : i32
    %10 = arith.extui %9 : i1 to i32
    %c0_i32_9 = arith.constant 0 : i32
    %11 = arith.cmpi ne, %10, %c0_i32_9 : i32
    scf.if %11 {
      %c0_10 = arith.constant 0 : index
      %c0_11 = arith.constant 0 : index
      %12 = vector.load %arg7[%c0_10, %c0_11] : memref<8x128xf32, #tpu.memory_space<vmem>>, vector<8x128xf32>
      %c0_12 = arith.constant 0 : index
      %c0_13 = arith.constant 0 : index
      %13 = vector.load %arg5[%c0_12, %c0_13] : memref<1x128xf32, #tpu.memory_space<vmem>>, vector<1x128xf32>
      %14 = vector.broadcast %13 : vector<1x128xf32> to vector<8x128xf32>
      %15 = arith.addf %12, %14 : vector<8x128xf32>
      %16 = math.tanh %15 : vector<8x128xf32>
      %c0_14 = arith.constant 0 : index
      %c0_15 = arith.constant 0 : index
      %17 = vector.load %arg6[%c0_14, %c0_15] : memref<8x128xf32, #tpu.memory_space<vmem>>, vector<8x128xf32>
      tpu.vector_store %arg6[%c0_14, %c0_15], %16 {strides = array<i32>} : memref<8x128xf32, #tpu.memory_space<vmem>>, vector<8x128xf32>,
    } else {
    }
    return
  }
  func.func @transform_0(%arg0: i32, %arg1: i32, %arg2: i32) -> (i32, i32) {
    %c0_i32 = arith.constant 0 : i32
    return %arg0, %arg2 : i32, i32
  }
  func.func @transform_1(%arg0: i32, %arg1: i32, %arg2: i32) -> (i32, i32) {
    %c0_i32 = arith.constant 0 : i32
    return %arg2, %arg1 : i32, i32
  }
  func.func @transform_2(%arg0: i32, %arg1: i32, %arg2: i32) -> (i32, i32) {
    %c0_i32 = arith.constant 0 : i32
    %c0_i32_0 = arith.constant 0 : i32
    return %c0_i32, %arg1 : i32, i32
  }
  func.func @transform_3(%arg0: i32, %arg1: i32, %arg2: i32) -> (i32, i32) {
    %c0_i32 = arith.constant 0 : i32
    return %arg0, %arg1 : i32, i32
  }
}

</mosaic_0001>

<llo_original>
// kernel: fwd.1
$region0: #{fwd.1}
  #allocation0 [shape = 'u32[]', space=smem, size = 0x4, offset = 0x4, fixed_abs, tag = 'smem constant byte address 0x4 - core index']
  #allocation1 [shape = 'u32[144,128]{1,0:T(1,128)}', space=vmem, size = 0x12000, scoped, tag = 'internal scratch']
  %s0 = inlined_call_operand.vmem [shape: f32[8,32], index: 0, kind: input, shape index: {}]
  %s1 = inlined_call_operand.vmem [shape: f32[32,64], index: 1, kind: input, shape index: {}]
  %s2 = inlined_call_operand.vmem [shape: f32[1,64], index: 2, kind: input, shape index: {}]
  %s3 = inlined_call_operand.vmem [shape: f32[64,16], index: 3, kind: input, shape index: {}]
  %s4 = inlined_call_operand.vmem [shape: f32[1,16], index: 4, kind: input, shape index: {}]
  %s5 = inlined_call_operand.hbm [shape: f32[8,16], index: 5, kind: output, shape index: {}]
  %s6 = sld [smem:[#allocation0]]
  $region30: #{fwd.1} parent=0
    _
  %s8 = ssub.s32 1, %s6
  %s9 = scalar_select 0, %s8, %s6
  $region1: #{fwd.1} parent=0
    #allocation2 [shape = 'u8[4096]{0}', space=vmem, size = 0x1000, scoped, tag = 'output window, operand 0, single buffered']
    #allocation3 [shape = 's32[1]{0}', space=sflag, size = 0x4, scoped, tag = 'scoped memory for fwd.1']
    %10 = vsyncpa [#allocation3], 0
    // Predicated region
    $region2: #{fwd.1} parent=1 // pred_check
      _
    $region3: #{fwd.1} parent=1 // pred_check_branch
      %12 = sbr.rel (0) target = $region5
    $region4: #{fwd.1} parent=1 // pred_region
      _
    $region5: #{fwd.1} parent=1 // pred_fallthru
      _
    // Predicated region
    $region6: #{fwd.1} parent=1 // pred_check
      _
    $region7: #{fwd.1} parent=1 // pred_check_branch
      %14 = sbr.rel (0) target = $region9
    $region8: #{fwd.1} parent=1 // pred_region
      _
    $region9: #{fwd.1} parent=1 // pred_fallthru
      _
    // Predicated region
    $region10: #{fwd.1} parent=1 // pred_check
      _
    $region11: #{fwd.1} parent=1 // pred_check_branch
      %16 = sbr.rel (0) target = $region13
    $region12: #{fwd.1} parent=1 // pred_region
      _
    $region13: #{fwd.1} parent=1 // pred_fallthru
      _
    // Predicated region
    $region14: #{fwd.1} parent=1 // pred_check
      _
    $region15: #{fwd.1} parent=1 // pred_check_branch
      %18 = sbr.rel (0) target = $region17
    $region16: #{fwd.1} parent=1 // pred_region
      _
    $region17: #{fwd.1} parent=1 // pred_fallthru
      _
    // Predicated region
    $region18: #{fwd.1} parent=1 // pred_check
      _
    $region19: #{fwd.1} parent=1 // pred_check_branch
      %20 = sbr.rel (0) target = $region21
    $region20: #{fwd.1} parent=1 // pred_region
      _
    $region21: #{fwd.1} parent=1 // pred_fallthru
      _
    %v21 = vld [vmem:[%s0] sm:$0xff]
    %v22 = vld [vmem:[%s1] sm:$0xff]
    %v23 = vld [vmem:[%s1 + $0x8] sm:$0xff]
    %v24 = vld [vmem:[%s1 + $0x10] sm:$0xff]
    %v25 = vld [vmem:[%s1 + $0x18] sm:$0xff]
    %v26 = vld [vmem:[%s2] sm:$0x1]
    %v28 = vlaneseq
    %v29 = vshrl.u32 %v28, 7
    %v30 = vsub.s32 0, %v29
    %v31 = vrot.slane %v26, %v30
    %vm33 = vcmask 261120
    %v35 = vsel %vm33, %v21, 0
    %37 = vmatprep.subr.mxu0 0.0
    %38 = vmatpush1.msra.mxu0 %v22
    %39 = vmatprep.subr.mxu0 0.0
    %40 = vmatpush1.msra.mxu0 %v23
    %41 = vmatprep.subr.mxu0 0.0
    %42 = vmatpush1.msra.mxu0 %v24
    %43 = vmatprep.subr.mxu0 0.0
    %44 = vmatpush1.msra.mxu0 %v25
    %45 = vmatprep.subr.mxu0 0.0
    %46 = vmatpush1.msra.mxu0 0.0
    %47 = vmatprep.subr.mxu0 0.0
    %48 = vmatpush1.msra.mxu0 0.0
    %49 = vmatprep.subr.mxu0 0.0
    %50 = vmatpush1.msra.mxu0 0.0
    %51 = vmatprep.subr.mxu0 0.0
    %52 = vmatpush1.msra.mxu0 0.0
    %53 = vmatprep.subr.mxu0 0.0
    %54 = vmatpush1.msra.mxu0 0.0
    %55 = vmatprep.subr.mxu0 0.0
    %56 = vmatpush1.msra.mxu0 0.0
    %57 = vmatprep.subr.mxu0 0.0
    %58 = vmatpush1.msra.mxu0 0.0
    %59 = vmatprep.subr.mxu0 0.0
    %60 = vmatpush1.msra.mxu0 0.0
    %61 = vmatprep.subr.mxu0 0.0
    %62 = vmatpush1.msra.mxu0 0.0
    %63 = vmatprep.subr.mxu0 0.0
    %64 = vmatpush1.msra.mxu0 0.0
    %65 = vmatprep.subr.mxu0 0.0
    %66 = vmatpush1.msra.mxu0 0.0
    %67 = vmatprep.subr.mxu0 0.0
    %68 = vmatpush1.msra.mxu0 0.0
    %69 = vmatprep.subr.mxu0 0.0
    %70 = vmatpush1.msra.mxu0 0.0
    %71 = vmatprep.subr.mxu0 0.0
    %72 = vmatpush1.msra.mxu0 0.0
    %73 = vmatprep.subr.mxu0 0.0
    %74 = vmatpush1.msra.mxu0 0.0
    %75 = vmatprep.subr.mxu0 0.0
    %76 = vmatpush1.msra.mxu0 0.0
    %77 = vmatprep.subr.mxu0 0.0
    %78 = vmatpush1.msra.mxu0 0.0
    %79 = vmatprep.subr.mxu0 0.0
    %80 = vmatpush1.msra.mxu0 0.0
    %81 = vmatprep.subr.mxu0 0.0
    %82 = vmatpush1.msra.mxu0 0.0
    %83 = vmatprep.subr.mxu0 0.0
    %84 = vmatpush1.msra.mxu0 0.0
    %85 = vmatprep.subr.mxu0 0.0
    %86 = vmatpush1.msra.mxu0 0.0
    %87 = vmatprep.subr.mxu0 0.0
    %88 = vmatpush1.msra.mxu0 0.0
    %89 = vmatprep.subr.mxu0 0.0
    %90 = vmatpush1.msra.mxu0 0.0
    %91 = vmatprep.subr.mxu0 0.0
    %92 = vmatpush1.msra.mxu0 0.0
    %93 = vmatprep.subr.mxu0 0.0
    %94 = vmatpush1.msra.mxu0 0.0
    %95 = vmatprep.subr.mxu0 0.0
    %96 = vmatpush1.msra.mxu0 0.0
    %97 = vmatprep.subr.mxu0 0.0
    %98 = vmatpush1.msra.mxu0 0.0
    %99 = vmatprep.subr.mxu0 0.0
    %100 = vmatpush1.msra.mxu0 0.0
    %101 = vmatprep.mubr.f32.mxu0 0.0
    %102 = vmatmul.mubr.f32.gmra.mrb[0].mxu0 %v35
    %v103 = vpop.f32.mrb[0].mxu0
    %v104 = vadd.f32 %v31, %v103
    %v105 = vpop.f32.mrb[0].mxu0
    %106 = vdwg.mxu0
    %v107 = vmax.f32 %v104, 0.0
    %v108 = vld [vmem:[%s3] sm:$0xff]
    %v109 = vld [vmem:[%s3 + $0x8] sm:$0xff]
    %v110 = vld [vmem:[%s3 + $0x10] sm:$0xff]
    %v111 = vld [vmem:[%s3 + $0x18] sm:$0xff]
    %v112 = vld [vmem:[%s3 + $0x20] sm:$0xff]
    %v113 = vld [vmem:[%s3 + $0x28] sm:$0xff]
    %v114 = vld [vmem:[%s3 + $0x30] sm:$0xff]
    %v115 = vld [vmem:[%s3 + $0x38] sm:$0xff]
    %v116 = vld [vmem:[%s4] sm:$0x1]
    %v118 = vlaneseq
    %v119 = vshrl.u32 %v118, 7
    %v120 = vsub.s32 0, %v119
    %v121 = vrot.slane %v116, %v120
    %vm123 = vcmask 523264
    %v125 = vsel %vm123, %v107, 0
    %127 = vmatprep.subr.mxu0 0.0
    %128 = vmatpush1.msra.mxu0 %v108
    %129 = vmatprep.subr.mxu0 0.0
    %130 = vmatpush1.msra.mxu0 %v109
    %131 = vmatprep.subr.mxu0 0.0
    %132 = vmatpush1.msra.mxu0 %v110
    %133 = vmatprep.subr.mxu0 0.0
    %134 = vmatpush1.msra.mxu0 %v111
    %135 = vmatprep.subr.mxu0 0.0
    %136 = vmatpush1.msra.mxu0 %v112
    %137 = vmatprep.subr.mxu0 0.0
    %138 = vmatpush1.msra.mxu0 %v113
    %139 = vmatprep.subr.mxu0 0.0
    %140 = vmatpush1.msra.mxu0 %v114
    %141 = vmatprep.subr.mxu0 0.0
    %142 = vmatpush1.msra.mxu0 %v115
    %143 = vmatprep.subr.mxu0 0.0
    %144 = vmatpush1.msra.mxu0 0.0
    %145 = vmatprep.subr.mxu0 0.0
    %146 = vmatpush1.msra.mxu0 0.0
    %147 = vmatprep.subr.mxu0 0.0
    %148 = vmatpush1.msra.mxu0 0.0
    %149 = vmatprep.subr.mxu0 0.0
    %150 = vmatpush1.msra.mxu0 0.0
    %151 = vmatprep.subr.mxu0 0.0
    %152 = vmatpush1.msra.mxu0 0.0
    %153 = vmatprep.subr.mxu0 0.0
    %154 = vmatpush1.msra.mxu0 0.0
    %155 = vmatprep.subr.mxu0 0.0
    %156 = vmatpush1.msra.mxu0 0.0
    %157 = vmatprep.subr.mxu0 0.0
    %158 = vmatpush1.msra.mxu0 0.0
    %159 = vmatprep.subr.mxu0 0.0
    %160 = vmatpush1.msra.mxu0 0.0
    %161 = vmatprep.subr.mxu0 0.0
    %162 = vmatpush1.msra.mxu0 0.0
    %163 = vmatprep.subr.mxu0 0.0
    %164 = vmatpush1.msra.mxu0 0.0
    %165 = vmatprep.subr.mxu0 0.0
    %166 = vmatpush1.msra.mxu0 0.0
    %167 = vmatprep.subr.mxu0 0.0
    %168 = vmatpush1.msra.mxu0 0.0
    %169 = vmatprep.subr.mxu0 0.0
    %170 = vmatpush1.msra.mxu0 0.0
    %171 = vmatprep.subr.mxu0 0.0
    %172 = vmatpush1.msra.mxu0 0.0
    %173 = vmatprep.subr.mxu0 0.0
    %174 = vmatpush1.msra.mxu0 0.0
    %175 = vmatprep.subr.mxu0 0.0
    %176 = vmatpush1.msra.mxu0 0.0
    %177 = vmatprep.subr.mxu0 0.0
    %178 = vmatpush1.msra.mxu0 0.0
    %179 = vmatprep.subr.mxu0 0.0
    %180 = vmatpush1.msra.mxu0 0.0
    %181 = vmatprep.subr.mxu0 0.0
    %182 = vmatpush1.msra.mxu0 0.0
    %183 = vmatprep.subr.mxu0 0.0
    %184 = vmatpush1.msra.mxu0 0.0
    %185 = vmatprep.subr.mxu0 0.0
    %186 = vmatpush1.msra.mxu0 0.0
    %187 = vmatprep.subr.mxu0 0.0
    %188 = vmatpush1.msra.mxu0 0.0
    %189 = vmatprep.subr.mxu0 0.0
    %190 = vmatpush1.msra.mxu0 0.0
    %191 = vmatprep.mubr.f32.mxu0 0.0
    %192 = vmatmul.mubr.f32.gmra.mrb[0].mxu0 %v125
    %v193 = vpop.f32.mrb[0].mxu0
    %v194 = vadd.f32 %v121, %v193
    %v195 = vpop.f32.mrb[0].mxu0
    %196 = vdwg.mxu0
    %v197 = vtanh.pop %v194
    %vm198 = vcmask 130048
    %199 = vst.msk [vmem:[#allocation2] sm:$0xff] %vm198, %v197
    // Predicated region
    $region22: #{fwd.1} parent=1 // pred_check
      _
    $region23: #{fwd.1} parent=1 // pred_check_branch
      %201 = sbr.rel (0) target = $region25
    $region24: #{fwd.1} parent=1 // pred_region
      %s203 = ssub.s32 128, 128
      %204 = vsyncadd [#allocation3], %s203
      %s206 = sshll.u32 [#allocation2], 4
      %s207 = int_to_ptr.vmem [resolvable:$true] %s206
      %209 = dma.vmem_to_hbm [thread:$0]  %s207, 128, %s5, [#allocation3]
    $region25: #{fwd.1} parent=1 // pred_fallthru
      _
    // Predicated region
    $region26: #{fwd.1} parent=1 // pred_check
      _
    $region27: #{fwd.1} parent=1 // pred_check_branch
      %211 = sbr.rel (0) target = $region29
    $region28: #{fwd.1} parent=1 // pred_region
      %212 = dma.done [#allocation3], 128
    $region29: #{fwd.1} parent=1 // pred_fallthru
      _
    %213 = vsyncpa [#allocation3], 1

// kernel: fwd.1
$region0: #{fwd.1}
  #allocation0 [shape = 'u32[]', space=smem, size = 0x4, offset = 0x4, fixed_abs, tag = 'smem constant byte address 0x4 - core index']
  #allocation1 [shape = 'u32[144,128]{1,0:T(1,128)}', space=vmem, size = 0x12000, scoped, tag = 'internal scratch']
  %s0 = inlined_call_operand.vmem [shape: f32[8,32], index: 0, kind: input, shape index: {}]
  %s1 = inlined_call_operand.vmem [shape: f32[32,64], index: 1, kind: input, shape index: {}]
  %s2 = inlined_call_operand.vmem [shape: f32[1,64], index: 2, kind: input, shape index: {}]
  %s3 = inlined_call_operand.vmem [shape: f32[64,16], index: 3, kind: input, shape index: {}]
  %s4 = inlined_call_operand.vmem [shape: f32[1,16], index: 4, kind: input, shape index: {}]
  %s5 = inlined_call_operand.hbm [shape: f32[8,16], index: 5, kind: output, shape index: {}]
  %s6 = sld [smem:[#allocation0]]
  $region30: #{fwd.1} parent=0
    _
  %s8 = ssub.s32 1, %s6
  %s9 = scalar_select 0, %s8, %s6
  $region1: #{fwd.1} parent=0
    #allocation2 [shape = 'u8[4096]{0}', space=vmem, size = 0x1000, scoped, tag = 'output window, operand 0, single buffered']
    #allocation3 [shape = 's32[1]{0}', space=sflag, size = 0x4, scoped, tag = 'scoped memory for fwd.1']
    %10 = vsyncpa [#allocation3], 0
    // Predicated region
    $region2: #{fwd.1} parent=1 // pred_check
      _
    $region3: #{fwd.1} parent=1 // pred_check_branch
      %12 = sbr.rel (0) target = $region5
    $region4: #{fwd.1} parent=1 // pred_region
      _
    $region5: #{fwd.1} parent=1 // pred_fallthru
      _
    // Predicated region
    $region6: #{fwd.1} parent=1 // pred_check
      _
    $region7: #{fwd.1} parent=1 // pred_check_branch
      %14 = sbr.rel (0) target = $region9
    $region8: #{fwd.1} parent=1 // pred_region
      _
    $region9: #{fwd.1} parent=1 // pred_fallthru
      _
    // Predicated region
    $region10: #{fwd.1} parent=1 // pred_check
      _
    $region11: #{fwd.1} parent=1 // pred_check_branch
      %16 = sbr.rel (0) target = $region13
    $region12: #{fwd.1} parent=1 // pred_region
      _
    $region13: #{fwd.1} parent=1 // pred_fallthru
      _
    // Predicated region
    $region14: #{fwd.1} parent=1 // pred_check
      _
    $region15: #{fwd.1} parent=1 // pred_check_branch
      %18 = sbr.rel (0) target = $region17
    $region16: #{fwd.1} parent=1 // pred_region
      _
    $region17: #{fwd.1} parent=1 // pred_fallthru
      _
    // Predicated region
    $region18: #{fwd.1} parent=1 // pred_check
      _
    $region19: #{fwd.1} parent=1 // pred_check_branch
      %20 = sbr.rel (0) target = $region21
    $region20: #{fwd.1} parent=1 // pred_region
      _
    $region21: #{fwd.1} parent=1 // pred_fallthru
      _
    %v21 = vld [vmem:[%s0] sm:$0xff]
    %v22 = vld [vmem:[%s1] sm:$0xff]
    %v23 = vld [vmem:[%s1 + $0x8] sm:$0xff]
    %v24 = vld [vmem:[%s1 + $0x10] sm:$0xff]
    %v25 = vld [vmem:[%s1 + $0x18] sm:$0xff]
    %v26 = vld [vmem:[%s2] sm:$0x1]
    %v28 = vlaneseq
    %v29 = vshrl.u32 %v28, 7
    %v30 = vsub.s32 0, %v29
    %v31 = vrot.slane %v26, %v30
    %vm33 = vcmask 261120
    %v35 = vsel %vm33, %v21, 0
    %37 = vmatprep.subr.mxu0 0.0
    %38 = vmatpush1.msra.mxu0 %v22
    %39 = vmatprep.subr.mxu0 0.0
    %40 = vmatpush1.msra.mxu0 %v23
    %41 = vmatprep.subr.mxu0 0.0
    %42 = vmatpush1.msra.mxu0 %v24
    %43 = vmatprep.subr.mxu0 0.0
    %44 = vmatpush1.msra.mxu0 %v25
    %45 = vmatprep.subr.mxu0 0.0
    %46 = vmatpush1.msra.mxu0 0.0
    %47 = vmatprep.subr.mxu0 0.0
    %48 = vmatpush1.msra.mxu0 0.0
    %49 = vmatprep.subr.mxu0 0.0
    %50 = vmatpush1.msra.mxu0 0.0
    %51 = vmatprep.subr.mxu0 0.0
    %52 = vmatpush1.msra.mxu0 0.0
    %53 = vmatprep.subr.mxu0 0.0
    %54 = vmatpush1.msra.mxu0 0.0
    %55 = vmatprep.subr.mxu0 0.0
    %56 = vmatpush1.msra.mxu0 0.0
    %57 = vmatprep.subr.mxu0 0.0
    %58 = vmatpush1.msra.mxu0 0.0
    %59 = vmatprep.subr.mxu0 0.0
    %60 = vmatpush1.msra.mxu0 0.0
    %61 = vmatprep.subr.mxu0 0.0
    %62 = vmatpush1.msra.mxu0 0.0
    %63 = vmatprep.subr.mxu0 0.0
    %64 = vmatpush1.msra.mxu0 0.0
    %65 = vmatprep.subr.mxu0 0.0
    %66 = vmatpush1.msra.mxu0 0.0
    %67 = vmatprep.subr.mxu0 0.0
    %68 = vmatpush1.msra.mxu0 0.0
    %69 = vmatprep.subr.mxu0 0.0
    %70 = vmatpush1.msra.mxu0 0.0
    %71 = vmatprep.subr.mxu0 0.0
    %72 = vmatpush1.msra.mxu0 0.0
    %73 = vmatprep.subr.mxu0 0.0
    %74 = vmatpush1.msra.mxu0 0.0
    %75 = vmatprep.subr.mxu0 0.0
    %76 = vmatpush1.msra.mxu0 0.0
    %77 = vmatprep.subr.mxu0 0.0
    %78 = vmatpush1.msra.mxu0 0.0
    %79 = vmatprep.subr.mxu0 0.0
    %80 = vmatpush1.msra.mxu0 0.0
    %81 = vmatprep.subr.mxu0 0.0
    %82 = vmatpush1.msra.mxu0 0.0
    %83 = vmatprep.subr.mxu0 0.0
    %84 = vmatpush1.msra.mxu0 0.0
    %85 = vmatprep.subr.mxu0 0.0
    %86 = vmatpush1.msra.mxu0 0.0
    %87 = vmatprep.subr.mxu0 0.0
    %88 = vmatpush1.msra.mxu0 0.0
    %89 = vmatprep.subr.mxu0 0.0
    %90 = vmatpush1.msra.mxu0 0.0
    %91 = vmatprep.subr.mxu0 0.0
    %92 = vmatpush1.msra.mxu0 0.0
    %93 = vmatprep.subr.mxu0 0.0
    %94 = vmatpush1.msra.mxu0 0.0
    %95 = vmatprep.subr.mxu0 0.0
    %96 = vmatpush1.msra.mxu0 0.0
    %97 = vmatprep.subr.mxu0 0.0
    %98 = vmatpush1.msra.mxu0 0.0
    %99 = vmatprep.subr.mxu0 0.0
    %100 = vmatpush1.msra.mxu0 0.0
    %101 = vmatprep.mubr.f32.mxu0 0.0
    %102 = vmatmul.mubr.f32.gmra.mrb[0].mxu0 %v35
    %v103 = vpop.f32.mrb[0].mxu0
    %v104 = vadd.f32 %v31, %v103
    %v105 = vpop.f32.mrb[0].mxu0
    %106 = vdwg.mxu0
    %v107 = vmax.f32 %v104, 0.0
    %v108 = vld [vmem:[%s3] sm:$0xff]
    %v109 = vld [vmem:[%s3 + $0x8] sm:$0xff]
    %v110 = vld [vmem:[%s3 + $0x10] sm:$0xff]
    %v111 = vld [vmem:[%s3 + $0x18] sm:$0xff]
    %v112 = vld [vmem:[%s3 + $0x20] sm:$0xff]
    %v113 = vld [vmem:[%s3 + $0x28] sm:$0xff]
    %v114 = vld [vmem:[%s3 + $0x30] sm:$0xff]
    %v115 = vld [vmem:[%s3 + $0x38] sm:$0xff]
    %v116 = vld [vmem:[%s4] sm:$0x1]
    %v118 = vlaneseq
    %v119 = vshrl.u32 %v118, 7
    %v120 = vsub.s32 0, %v119
    %v121 = vrot.slane %v116, %v120
    %vm123 = vcmask 523264
    %v125 = vsel %vm123, %v107, 0
    %127 = vmatprep.subr.mxu0 0.0
    %128 = vmatpush1.msra.mxu0 %v108
    %129 = vmatprep.subr.mxu0 0.0
    %130 = vmatpush1.msra.mxu0 %v109
    %131 = vmatprep.subr.mxu0 0.0
    %132 = vmatpush1.msra.mxu0 %v110
    %133 = vmatprep.subr.mxu0 0.0
    %134 = vmatpush1.msra.mxu0 %v111
    %135 = vmatprep.subr.mxu0 0.0
    %136 = vmatpush1.msra.mxu0 %v112
    %137 = vmatprep.subr.mxu0 0.0
    %138 = vmatpush1.msra.mxu0 %v113
    %139 = vmatprep.subr.mxu0 0.0
    %140 = vmatpush1.msra.mxu0 %v114
    %141 = vmatprep.subr.mxu0 0.0
    %142 = vmatpush1.msra.mxu0 %v115
    %143 = vmatprep.subr.mxu0 0.0
    %144 = vmatpush1.msra.mxu0 0.0
    %145 = vmatprep.subr.mxu0 0.0
    %146 = vmatpush1.msra.mxu0 0.0
    %147 = vmatprep.subr.mxu0 0.0
    %148 = vmatpush1.msra.mxu0 0.0
    %149 = vmatprep.subr.mxu0 0.0
    %150 = vmatpush1.msra.mxu0 0.0
    %151 = vmatprep.subr.mxu0 0.0
    %152 = vmatpush1.msra.mxu0 0.0
    %153 = vmatprep.subr.mxu0 0.0
    %154 = vmatpush1.msra.mxu0 0.0
    %155 = vmatprep.subr.mxu0 0.0
    %156 = vmatpush1.msra.mxu0 0.0
    %157 = vmatprep.subr.mxu0 0.0
    %158 = vmatpush1.msra.mxu0 0.0
    %159 = vmatprep.subr.mxu0 0.0
    %160 = vmatpush1.msra.mxu0 0.0
    %161 = vmatprep.subr.mxu0 0.0
    %162 = vmatpush1.msra.mxu0 0.0
    %163 = vmatprep.subr.mxu0 0.0
    %164 = vmatpush1.msra.mxu0 0.0
    %165 = vmatprep.subr.mxu0 0.0
    %166 = vmatpush1.msra.mxu0 0.0
    %167 = vmatprep.subr.mxu0 0.0
    %168 = vmatpush1.msra.mxu0 0.0
    %169 = vmatprep.subr.mxu0 0.0
    %170 = vmatpush1.msra.mxu0 0.0
    %171 = vmatprep.subr.mxu0 0.0
    %172 = vmatpush1.msra.mxu0 0.0
    %173 = vmatprep.subr.mxu0 0.0
    %174 = vmatpush1.msra.mxu0 0.0
    %175 = vmatprep.subr.mxu0 0.0
    %176 = vmatpush1.msra.mxu0 0.0
    %177 = vmatprep.subr.mxu0 0.0
    %178 = vmatpush1.msra.mxu0 0.0
    %179 = vmatprep.subr.mxu0 0.0
    %180 = vmatpush1.msra.mxu0 0.0
    %181 = vmatprep.subr.mxu0 0.0
    %182 = vmatpush1.msra.mxu0 0.0
    %183 = vmatprep.subr.mxu0 0.0
    %184 = vmatpush1.msra.mxu0 0.0
    %185 = vmatprep.subr.mxu0 0.0
    %186 = vmatpush1.msra.mxu0 0.0
    %187 = vmatprep.subr.mxu0 0.0
    %188 = vmatpush1.msra.mxu0 0.0
    %189 = vmatprep.subr.mxu0 0.0
    %190 = vmatpush1.msra.mxu0 0.0
    %191 = vmatprep.mubr.f32.mxu0 0.0
    %192 = vmatmul.mubr.f32.gmra.mrb[0].mxu0 %v125
    %v193 = vpop.f32.mrb[0].mxu0
    %v194 = vadd.f32 %v121, %v193
    %v195 = vpop.f32.mrb[0].mxu0
    %196 = vdwg.mxu0
    %v197 = vtanh.pop %v194
    %vm198 = vcmask 130048
    %199 = vst.msk [vmem:[#allocation2] sm:$0xff] %vm198, %v197
    // Predicated region
    $region22: #{fwd.1} parent=1 // pred_check
      _
    $region23: #{fwd.1} parent=1 // pred_check_branch
      %201 = sbr.rel (0) target = $region25
    $region24: #{fwd.1} parent=1 // pred_region
      %s203 = ssub.s32 128, 128
      %204 = vsyncadd [#allocation3], %s203
      %s206 = sshll.u32 [#allocation2], 4
      %s207 = int_to_ptr.vmem [resolvable:$true] %s206
      %209 = dma.vmem_to_hbm [thread:$0]  %s207, 128, %s5, [#allocation3]
    $region25: #{fwd.1} parent=1 // pred_fallthru
      _
    // Predicated region
    $region26: #{fwd.1} parent=1 // pred_check
      _
    $region27: #{fwd.1} parent=1 // pred_check_branch
      %211 = sbr.rel (0) target = $region29
    $region28: #{fwd.1} parent=1 // pred_region
      %212 = dma.done [#allocation3], 128
    $region29: #{fwd.1} parent=1 // pred_fallthru
      _
    %213 = vsyncpa [#allocation3], 1

// kernel: fwd.2
$region0: #{fwd.2}
  #allocation0 [shape = 'u32[]', space=smem, size = 0x4, offset = 0x4, fixed_abs, tag = 'smem constant byte address 0x4 - core index']
  #allocation1 [shape = 'u32[144,128]{1,0:T(1,128)}', space=vmem, size = 0x12000, scoped, tag = 'internal scratch']
  #allocation2 [shape = 'f32[8,128]{1,0:T(8,128)}', space=vmem, size = 0x1000, scoped, tag = 'scratch operand']
  %s0 = inlined_call_operand.vmem [shape: f32[8,128], index: 0, kind: input, shape index: {}]
  %s1 = inlined_call_operand.vmem [shape: f32[128,128], index: 1, kind: input, shape index: {}]
  %s2 = inlined_call_operand.vmem [shape: f32[1,128], index: 2, kind: input, shape index: {}]
  %s3 = inlined_call_operand.vmem [shape: f32[8,128], index: 3, kind: output, shape index: {}]
  %s4 = sld [smem:[#allocation0]]
  $region30: #{fwd.2} parent=0
    _
  %s6 = ssub.s32 1, %s4
  %s7 = scalar_select 0, %s6, %s4
  // Predicated region
  $region2: #{fwd.2} parent=0 // pred_check
    _
  $region3: #{fwd.2} parent=0 // pred_check_branch
    %9 = sbr.rel (0) target = $region5
  $region4: #{fwd.2} parent=0 // pred_region
    _
  $region5: #{fwd.2} parent=0 // pred_fallthru
    _
  // Predicated region
  $region6: #{fwd.2} parent=0 // pred_check
    _
  $region7: #{fwd.2} parent=0 // pred_check_branch
    %11 = sbr.rel (0) target = $region9
  $region8: #{fwd.2} parent=0 // pred_region
    _
  $region9: #{fwd.2} parent=0 // pred_fallthru
    _
  // Predicated region
  $region10: #{fwd.2} parent=0 // pred_check
    _
  $region11: #{fwd.2} parent=0 // pred_check_branch
    %13 = sbr.rel (0) target = $region13
  $region12: #{fwd.2} parent=0 // pred_region
    _
  $region13: #{fwd.2} parent=0 // pred_fallthru
    _
  %p14 = scmp.eq.s32.totalorder 0, 0
  // Predicated region
  $region14: #{fwd.2} parent=0 // pred_check
    %p15 = pneg %p14
  $region15: #{fwd.2} parent=0 // pred_check_branch
    %17 = sbr.rel (%p15) target = $region17
  $region16: #{fwd.2} parent=0 // pred_region
    %18 = vst [vmem:[#allocation2] sm:$0xff] 0.0
  $region17: #{fwd.2} parent=0 // pred_fallthru
    _
  %v19 = vld [vmem:[#allocation2] sm:$0xff]
  %v20 = vld [vmem:[%s0] sm:$0xff]
  %v21 = vld [vmem:[%s1] sm:$0xff]
  %v22 = vld [vmem:[%s1 + $0x8] sm:$0xff]
  %v23 = vld [vmem:[%s1 + $0x10] sm:$0xff]
  %v24 = vld [vmem:[%s1 + $0x18] sm:$0xff]
  %v25 = vld [vmem:[%s1 + $0x20] sm:$0xff]
  %v26 = vld [vmem:[%s1 + $0x28] sm:$0xff]
  %v27 = vld [vmem:[%s1 + $0x30] sm:$0xff]
  %v28 = vld [vmem:[%s1 + $0x38] sm:$0xff]
  %v29 = vld [vmem:[%s1 + $0x40] sm:$0xff]
  %v30 = vld [vmem:[%s1 + $0x48] sm:$0xff]
  %v31 = vld [vmem:[%s1 + $0x50] sm:$0xff]
  %v32 = vld [vmem:[%s1 + $0x58] sm:$0xff]
  %v33 = vld [vmem:[%s1 + $0x60] sm:$0xff]
  %v34 = vld [vmem:[%s1 + $0x68] sm:$0xff]
  %v35 = vld [vmem:[%s1 + $0x70] sm:$0xff]
  %v36 = vld [vmem:[%s1 + $0x78] sm:$0xff]
  %37 = vmatprep.subr.mxu0 0.0
  %38 = vmatpush1.msra.mxu0 %v21
  %39 = vmatprep.subr.mxu0 0.0
  %40 = vmatpush1.msra.mxu0 %v22
  %41 = vmatprep.subr.mxu0 0.0
  %42 = vmatpush1.msra.mxu0 %v23
  %43 = vmatprep.subr.mxu0 0.0
  %44 = vmatpush1.msra.mxu0 %v24
  %45 = vmatprep.subr.mxu0 0.0
  %46 = vmatpush1.msra.mxu0 %v25
  %47 = vmatprep.subr.mxu0 0.0
  %48 = vmatpush1.msra.mxu0 %v26
  %49 = vmatprep.subr.mxu0 0.0
  %50 = vmatpush1.msra.mxu0 %v27
  %51 = vmatprep.subr.mxu0 0.0
  %52 = vmatpush1.msra.mxu0 %v28
  %53 = vmatprep.subr.mxu0 0.0
  %54 = vmatpush1.msra.mxu0 %v29
  %55 = vmatprep.subr.mxu0 0.0
  %56 = vmatpush1.msra.mxu0 %v30
  %57 = vmatprep.subr.mxu0 0.0
  %58 = vmatpush1.msra.mxu0 %v31
  %59 = vmatprep.subr.mxu0 0.0
  %60 = vmatpush1.msra.mxu0 %v32
  %61 = vmatprep.subr.mxu0 0.0
  %62 = vmatpush1.msra.mxu0 %v33
  %63 = vmatprep.subr.mxu0 0.0
  %64 = vmatpush1.msra.mxu0 %v34
  %65 = vmatprep.subr.mxu0 0.0
  %66 = vmatpush1.msra.mxu0 %v35
  %67 = vmatprep.subr.mxu0 0.0
  %68 = vmatpush1.msra.mxu0 %v36
  %69 = vmatprep.subr.mxu0 0.0
  %70 = vmatpush1.msra.mxu0 0.0
  %71 = vmatprep.subr.mxu0 0.0
  %72 = vmatpush1.msra.mxu0 0.0
  %73 = vmatprep.subr.mxu0 0.0
  %74 = vmatpush1.msra.mxu0 0.0
  %75 = vmatprep.subr.mxu0 0.0
  %76 = vmatpush1.msra.mxu0 0.0
  %77 = vmatprep.subr.mxu0 0.0
  %78 = vmatpush1.msra.mxu0 0.0
  %79 = vmatprep.subr.mxu0 0.0
  %80 = vmatpush1.msra.mxu0 0.0
  %81 = vmatprep.subr.mxu0 0.0
  %82 = vmatpush1.msra.mxu0 0.0
  %83 = vmatprep.subr.mxu0 0.0
  %84 = vmatpush1.msra.mxu0 0.0
  %85 = vmatprep.subr.mxu0 0.0
  %86 = vmatpush1.msra.mxu0 0.0
  %87 = vmatprep.subr.mxu0 0.0
  %88 = vmatpush1.msra.mxu0 0.0
  %89 = vmatprep.subr.mxu0 0.0
  %90 = vmatpush1.msra.mxu0 0.0
  %91 = vmatprep.subr.mxu0 0.0
  %92 = vmatpush1.msra.mxu0 0.0
  %93 = vmatprep.subr.mxu0 0.0
  %94 = vmatpush1.msra.mxu0 0.0
  %95 = vmatprep.subr.mxu0 0.0
  %96 = vmatpush1.msra.mxu0 0.0
  %97 = vmatprep.subr.mxu0 0.0
  %98 = vmatpush1.msra.mxu0 0.0
  %99 = vmatprep.subr.mxu0 0.0
  %100 = vmatpush1.msra.mxu0 0.0
  %101 = vmatprep.mubr.f32.mxu0 0.0
  %102 = vmatmul.mubr.f32.gmra.mrb[0].mxu0 %v20
  %v103 = vpop.f32.mrb[0].mxu0
  %v104 = vadd.f32 0.0, %v103
  %v105 = vpop.f32.mrb[0].mxu0
  %106 = vdwg.mxu0
  %v107 = vadd.f32 %v19, %v104
  %108 = vst [vmem:[#allocation2] sm:$0xff] %v107
  // Predicated region
  $region18: #{fwd.2} parent=0 // pred_check
    %p109 = pneg %p14
  $region19: #{fwd.2} parent=0 // pred_check_branch
    %111 = sbr.rel (%p109) target = $region21
  $region20: #{fwd.2} parent=0 // pred_region
    %v112 = vld [vmem:[#allocation2] sm:$0xff]
    %v113 = vld [vmem:[%s2] sm:$0x1]
    %v115 = vlaneseq
    %v116 = vshrl.u32 %v115, 7
    %v117 = vsub.s32 0, %v116
    %v118 = vrot.slane %v113, %v117
    %v120 = vadd.f32 %v112, %v118
    %v121 = vmax.f32 %v120, 0.0
    %122 = vst [vmem:[%s3] sm:$0xff] %v121
  $region21: #{fwd.2} parent=0 // pred_fallthru
    _
  // Predicated region
  $region22: #{fwd.2} parent=0 // pred_check
    _
  $region23: #{fwd.2} parent=0 // pred_check_branch
    %124 = sbr.rel (0) target = $region25
  $region24: #{fwd.2} parent=0 // pred_region
    _
  $region25: #{fwd.2} parent=0 // pred_fallthru
    _
  // Predicated region
  $region26: #{fwd.2} parent=0 // pred_check
    _
  $region27: #{fwd.2} parent=0 // pred_check_branch
    %126 = sbr.rel (0) target = $region29
  $region28: #{fwd.2} parent=0 // pred_region
    _
  $region29: #{fwd.2} parent=0 // pred_fallthru
    _

// kernel: fwd.3
$region0: #{fwd.3}
  #allocation0 [shape = 'u32[]', space=smem, size = 0x4, offset = 0x4, fixed_abs, tag = 'smem constant byte address 0x4 - core index']
  #allocation1 [shape = 'u32[144,128]{1,0:T(1,128)}', space=vmem, size = 0x12000, scoped, tag = 'internal scratch']
  #allocation2 [shape = 'f32[8,128]{1,0:T(8,128)}', space=vmem, size = 0x1000, scoped, tag = 'scratch operand']
  %s0 = inlined_call_operand.vmem [shape: f32[8,128], index: 0, kind: input, shape index: {}]
  %s1 = inlined_call_operand.vmem [shape: f32[128,128], index: 1, kind: input, shape index: {}]
  %s2 = inlined_call_operand.vmem [shape: f32[1,128], index: 2, kind: input, shape index: {}]
  %s3 = inlined_call_operand.hbm [shape: f32[8,128], index: 3, kind: output, shape index: {}]
  %s4 = sld [smem:[#allocation0]]
  $region30: #{fwd.3} parent=0
    _
  %s6 = ssub.s32 1, %s4
  %s7 = scalar_select 0, %s6, %s4
  $region1: #{fwd.3} parent=0
    #allocation3 [shape = 'u8[4096]{0}', space=vmem, size = 0x1000, scoped, tag = 'output window, operand 0, single buffered']
    #allocation4 [shape = 's32[1]{0}', space=sflag, size = 0x4, scoped, tag = 'scoped memory for fwd.3']
    %8 = vsyncpa [#allocation4], 0
    // Predicated region
    $region2: #{fwd.3} parent=1 // pred_check
      _
    $region3: #{fwd.3} parent=1 // pred_check_branch
      %10 = sbr.rel (0) target = $region5
    $region4: #{fwd.3} parent=1 // pred_region
      _
    $region5: #{fwd.3} parent=1 // pred_fallthru
      _
    // Predicated region
    $region6: #{fwd.3} parent=1 // pred_check
      _
    $region7: #{fwd.3} parent=1 // pred_check_branch
      %12 = sbr.rel (0) target = $region9
    $region8: #{fwd.3} parent=1 // pred_region
      _
    $region9: #{fwd.3} parent=1 // pred_fallthru
      _
    // Predicated region
    $region10: #{fwd.3} parent=1 // pred_check
      _
    $region11: #{fwd.3} parent=1 // pred_check_branch
      %14 = sbr.rel (0) target = $region13
    $region12: #{fwd.3} parent=1 // pred_region
      _
    $region13: #{fwd.3} parent=1 // pred_fallthru
      _
    %p15 = scmp.eq.s32.totalorder 0, 0
    // Predicated region
    $region14: #{fwd.3} parent=1 // pred_check
      %p16 = pneg %p15
    $region15: #{fwd.3} parent=1 // pred_check_branch
      %18 = sbr.rel (%p16) target = $region17
    $region16: #{fwd.3} parent=1 // pred_region
      %19 = vst [vmem:[#allocation2] sm:$0xff] 0.0
    $region17: #{fwd.3} parent=1 // pred_fallthru
      _
    %v20 = vld [vmem:[#allocation2] sm:$0xff]
    %v21 = vld [vmem:[%s0] sm:$0xff]
    %v22 = vld [vmem:[%s1] sm:$0xff]
    %v23 = vld [vmem:[%s1 + $0x8] sm:$0xff]
    %v24 = vld [vmem:[%s1 + $0x10] sm:$0xff]
    %v25 = vld [vmem:[%s1 + $0x18] sm:$0xff]
    %v26 = vld [vmem:[%s1 + $0x20] sm:$0xff]
    %v27 = vld [vmem:[%s1 + $0x28] sm:$0xff]
    %v28 = vld [vmem:[%s1 + $0x30] sm:$0xff]
    %v29 = vld [vmem:[%s1 + $0x38] sm:$0xff]
    %v30 = vld [vmem:[%s1 + $0x40] sm:$0xff]
    %v31 = vld [vmem:[%s1 + $0x48] sm:$0xff]
    %v32 = vld [vmem:[%s1 + $0x50] sm:$0xff]
    %v33 = vld [vmem:[%s1 + $0x58] sm:$0xff]
    %v34 = vld [vmem:[%s1 + $0x60] sm:$0xff]
    %v35 = vld [vmem:[%s1 + $0x68] sm:$0xff]
    %v36 = vld [vmem:[%s1 + $0x70] sm:$0xff]
    %v37 = vld [vmem:[%s1 + $0x78] sm:$0xff]
    %38 = vmatprep.subr.mxu0 0.0
    %39 = vmatpush1.msra.mxu0 %v22
    %40 = vmatprep.subr.mxu0 0.0
    %41 = vmatpush1.msra.mxu0 %v23
    %42 = vmatprep.subr.mxu0 0.0
    %43 = vmatpush1.msra.mxu0 %v24
    %44 = vmatprep.subr.mxu0 0.0
    %45 = vmatpush1.msra.mxu0 %v25
    %46 = vmatprep.subr.mxu0 0.0
    %47 = vmatpush1.msra.mxu0 %v26
    %48 = vmatprep.subr.mxu0 0.0
    %49 = vmatpush1.msra.mxu0 %v27
    %50 = vmatprep.subr.mxu0 0.0
    %51 = vmatpush1.msra.mxu0 %v28
    %52 = vmatprep.subr.mxu0 0.0
    %53 = vmatpush1.msra.mxu0 %v29
    %54 = vmatprep.subr.mxu0 0.0
    %55 = vmatpush1.msra.mxu0 %v30
    %56 = vmatprep.subr.mxu0 0.0
    %57 = vmatpush1.msra.mxu0 %v31
    %58 = vmatprep.subr.mxu0 0.0
    %59 = vmatpush1.msra.mxu0 %v32
    %60 = vmatprep.subr.mxu0 0.0
    %61 = vmatpush1.msra.mxu0 %v33
    %62 = vmatprep.subr.mxu0 0.0
    %63 = vmatpush1.msra.mxu0 %v34
    %64 = vmatprep.subr.mxu0 0.0
    %65 = vmatpush1.msra.mxu0 %v35
    %66 = vmatprep.subr.mxu0 0.0
    %67 = vmatpush1.msra.mxu0 %v36
    %68 = vmatprep.subr.mxu0 0.0
    %69 = vmatpush1.msra.mxu0 %v37
    %70 = vmatprep.subr.mxu0 0.0
    %71 = vmatpush1.msra.mxu0 0.0
    %72 = vmatprep.subr.mxu0 0.0
    %73 = vmatpush1.msra.mxu0 0.0
    %74 = vmatprep.subr.mxu0 0.0
    %75 = vmatpush1.msra.mxu0 0.0
    %76 = vmatprep.subr.mxu0 0.0
    %77 = vmatpush1.msra.mxu0 0.0
    %78 = vmatprep.subr.mxu0 0.0
    %79 = vmatpush1.msra.mxu0 0.0
    %80 = vmatprep.subr.mxu0 0.0
    %81 = vmatpush1.msra.mxu0 0.0
    %82 = vmatprep.subr.mxu0 0.0
    %83 = vmatpush1.msra.mxu0 0.0
    %84 = vmatprep.subr.mxu0 0.0
    %85 = vmatpush1.msra.mxu0 0.0
    %86 = vmatprep.subr.mxu0 0.0
    %87 = vmatpush1.msra.mxu0 0.0
    %88 = vmatprep.subr.mxu0 0.0
    %89 = vmatpush1.msra.mxu0 0.0
    %90 = vmatprep.subr.mxu0 0.0
    %91 = vmatpush1.msra.mxu0 0.0
    %92 = vmatprep.subr.mxu0 0.0
    %93 = vmatpush1.msra.mxu0 0.0
    %94 = vmatprep.subr.mxu0 0.0
    %95 = vmatpush1.msra.mxu0 0.0
    %96 = vmatprep.subr.mxu0 0.0
    %97 = vmatpush1.msra.mxu0 0.0
    %98 = vmatprep.subr.mxu0 0.0
    %99 = vmatpush1.msra.mxu0 0.0
    %100 = vmatprep.subr.mxu0 0.0
    %101 = vmatpush1.msra.mxu0 0.0
    %102 = vmatprep.mubr.f32.mxu0 0.0
    %103 = vmatmul.mubr.f32.gmra.mrb[0].mxu0 %v21
    %v104 = vpop.f32.mrb[0].mxu0
    %v105 = vadd.f32 0.0, %v104
    %v106 = vpop.f32.mrb[0].mxu0
    %107 = vdwg.mxu0
    %v108 = vadd.f32 %v20, %v105
    %109 = vst [vmem:[#allocation2] sm:$0xff] %v108
    // Predicated region
    $region18: #{fwd.3} parent=1 // pred_check
      %p110 = pneg %p15
    $region19: #{fwd.3} parent=1 // pred_check_branch
      %112 = sbr.rel (%p110) target = $region21
    $region20: #{fwd.3} parent=1 // pred_region
      %v113 = vld [vmem:[#allocation2] sm:$0xff]
      %v114 = vld [vmem:[%s2] sm:$0x1]
      %v116 = vlaneseq
      %v117 = vshrl.u32 %v116, 7
      %v118 = vsub.s32 0, %v117
      %v119 = vrot.slane %v114, %v118
      %v121 = vadd.f32 %v113, %v119
      %v122 = vtanh.pop %v121
      %123 = vst [vmem:[#allocation3] sm:$0xff] %v122
    $region21: #{fwd.3} parent=1 // pred_fallthru
      _
    // Predicated region
    $region22: #{fwd.3} parent=1 // pred_check
      _
    $region23: #{fwd.3} parent=1 // pred_check_branch
      %125 = sbr.rel (0) target = $region25
    $region24: #{fwd.3} parent=1 // pred_region
      %s127 = ssub.s32 128, 128
      %128 = vsyncadd [#allocation4], %s127
      %s130 = sshll.u32 [#allocation3], 4
      %s131 = int_to_ptr.vmem [resolvable:$true] %s130
      %133 = dma.vmem_to_hbm [thread:$0]  %s131, 128, %s3, [#allocation4]
    $region25: #{fwd.3} parent=1 // pred_fallthru
      _
    // Predicated region
    $region26: #{fwd.3} parent=1 // pred_check
      _
    $region27: #{fwd.3} parent=1 // pred_check_branch
      %135 = sbr.rel (0) target = $region29
    $region28: #{fwd.3} parent=1 // pred_region
      %136 = dma.done [#allocation4], 128
    $region29: #{fwd.3} parent=1 // pred_fallthru
      _
    %137 = vsyncpa [#allocation4], 1

</llo_original>
